<compile_context>
chip_gen: v7x
topology: tpu7x:2x2x1
jax: 0.10.0
libtpu: 0.0.40
codegen_flags: <defaults>
</compile_context>

<pallas_src>
import functools

import jax
import jax.numpy as jnp
from jax.experimental import pallas as pl
from jax.experimental.pallas import tpu as pltpu


# ----------------------------------------------------------------------------
# Kernels
# ----------------------------------------------------------------------------
def _layernorm_kernel(x_ref, w_ref, o_ref, *, eps, inv_h):
    """Standard path: one original row per VMEM row; reduce over the lane axis."""
    xf = x_ref[...].astype(jnp.float32)                      # (tile_rows, hidden)
    mean = jnp.sum(xf, axis=-1, keepdims=True) * inv_h       # two-pass: mean first
    xc = xf - mean
    var = jnp.sum(xc * xc, axis=-1, keepdims=True) * inv_h   # then centered moment
    inv = jax.lax.rsqrt(var + eps)                           # EUP; free in mem-bound kernel
    w = w_ref[...].astype(jnp.float32)                       # (1, hidden) broadcast
    # Padded rows of a ragged final block may normalize garbage, but those
    # rows are never written back, so results stay correct.
    o_ref[...] = (xc * inv * w).astype(o_ref.dtype)


def _layernorm_packed_kernel(x_ref, w_ref, b_ref, o_ref, *, eps, inv_h):
    """Packed path (hidden < 128, 128 % hidden == 0): k rows per 128-wide row.

    b_ref is a (128, 128) block-diagonal ones matrix; xf @ B yields the
    per-original-row sum broadcast back across its segment, so the whole
    reduction rides on the MXU and every lane/store is dense.
    """
    xf = x_ref[...].astype(jnp.float32)                      # (tile_rows, 128)
    B = b_ref[...]                                           # (128, 128) f32
    mean = jnp.dot(xf, B, preferred_element_type=jnp.float32) * inv_h
    xc = xf - mean
    var = jnp.dot(xc * xc, B, preferred_element_type=jnp.float32) * inv_h
    inv = jax.lax.rsqrt(var + eps)
    w = w_ref[...].astype(jnp.float32)                       # (1, 128) = weight tiled k times
    o_ref[...] = (xc * inv * w).astype(o_ref.dtype)


# ----------------------------------------------------------------------------
# Wrapper
# ----------------------------------------------------------------------------
def _round_down(v, m):
    return (v // m) * m


def _usable_vmem_bytes():
    """Conservative per-TensorCore VMEM budget.

    get_tpu_info may report per-chip capacity on multi-core parts, so clamp to
    the smallest per-TC VMEM across supported chips (64 MiB on v7x).
    """
    cap = 64 * 1024 * 1024
    try:
        cap = min(cap, int(pltpu.get_tpu_info().vmem_capacity_bytes))
    except Exception:
        pass
    return cap


def _choose_tile_rows(width, n_rows, dtype_bytes, sub, usable_vmem):
    # Per-row working set: double-buffered in + out blocks plus ~4 f32-wide
    # temporaries (xf, centered, squared, normalized) inside the kernel.
    per_row = width * (4 * dtype_bytes + 4 * 4)
    budget = (usable_vmem * 3) // 4
    t = budget // max(per_row, 1)
    t = max(sub, _round_down(t, sub))
    t = min(t, 1024)                 # past the measured HBM-roofline knee
    if t >= n_rows:
        return n_rows                # full-extent block (legal for any size)
    return t


def layer_norm(x, weight=None, *, eps=1e-6):
    """LayerNorm over the last dim of x, matching F.layer_norm(x, (H,), weight, eps)."""
    orig_shape = x.shape
    hidden = orig_shape[-1]
    rows = 1
    for d in orig_shape[:-1]:
        rows *= d

    if weight is None:
        # elementwise_affine=False -> identity scale.
        weight = jnp.ones((hidden,), dtype=x.dtype)

    x2 = x.reshape(rows, hidden)
    dtype_bytes = jnp.dtype(x.dtype).itemsize
    sub = max(8, 32 // max(dtype_bytes, 1))     # sublane multiple (8 f32, 16 bf16)
    usable_vmem = _usable_vmem_bytes()

    use_packed = (hidden < 128) and (128 % hidden == 0)

    if use_packed:
        # Pack k original rows per lane-dense 128-wide row.
        k = 128 // hidden
        width = 128
        rows_p = ((rows + k - 1) // k) * k
        if rows_p != rows:
            x2 = jnp.pad(x2, ((0, rows_p - rows), (0, 0)))   # zero rows are harmless
        n_rows = rows_p // k
        x_in = x2.reshape(n_rows, width)
        w_in = jnp.tile(weight.reshape(-1), (k,)).reshape(1, width)
        idx = jnp.arange(width)
        seg = (idx[:, None] // hidden == idx[None, :] // hidden)
        b_in = seg.astype(jnp.float32)                        # (128, 128) block-diag ones
        kernel = functools.partial(
            _layernorm_packed_kernel, eps=float(eps), inv_h=1.0 / float(hidden))
    else:
        width = hidden
        n_rows = rows
        x_in = x2
        w_in = weight.reshape(1, width)
        b_in = None
        kernel = functools.partial(
            _layernorm_kernel, eps=float(eps), inv_h=1.0 / float(hidden))

    tile_rows = _choose_tile_rows(width, n_rows, dtype_bytes, sub, usable_vmem)
    grid = (pl.cdiv(n_rows, tile_rows),)

    # ---- Explicit VMEM budget (double-buffered blocks + f32 temps + slack) --
    io_block = tile_rows * width * dtype_bytes
    f32_block = tile_rows * width * 4
    vmem_limit = 4 * io_block + 4 * f32_block + (4 << 20)
    vmem_limit = min(max(vmem_limit, 32 << 20), usable_vmem - (8 << 20))

    # ---- Cost estimate: bandwidth-heavy custom call hint for XLA ------------
    flops = 8 * n_rows * width
    if use_packed:
        flops += 4 * n_rows * width * width          # two (T,128)x(128,128) matmuls
    bytes_accessed = 2 * n_rows * width * dtype_bytes + width * dtype_bytes
    if use_packed:
        bytes_accessed += width * width * 4
    cost = pl.CostEstimate(flops=int(flops), transcendentals=int(n_rows),
                           bytes_accessed=int(bytes_accessed))

    in_specs = [
        pl.BlockSpec((tile_rows, width), lambda i: (i, 0)),
        # Weight (and segment matrix): constant block index -> fetched once.
        pl.BlockSpec((1, width), lambda i: (0, 0)),
    ]
    operands = [x_in, w_in]
    if use_packed:
        in_specs.append(pl.BlockSpec((width, width), lambda i: (0, 0)))
        operands.append(b_in)

    out = pl.pallas_call(
        kernel,
        out_shape=jax.ShapeDtypeStruct((n_rows, width), x.dtype),
        grid_spec=pltpu.PrefetchScalarGridSpec(
            num_scalar_prefetch=0,
            grid=grid,
            in_specs=in_specs,
            out_specs=pl.BlockSpec((tile_rows, width), lambda i: (i, 0)),
        ),
        compiler_params=pltpu.CompilerParams(
            dimension_semantics=("parallel",),
            vmem_limit_bytes=int(vmem_limit),
        ),
        cost_estimate=cost,
    )(*operands)

    if use_packed:
        out = out.reshape(-1, hidden)[:rows]
    return out.reshape(orig_shape)


# ----------------------------------------------------------------------------
# Pure-JAX reference
# ----------------------------------------------------------------------------
def layer_norm_ref(x, weight, eps=1e-6):
    xf = x.astype(jnp.float32)
    mean = jnp.mean(xf, axis=-1, keepdims=True)
    var = jnp.mean((xf - mean) ** 2, axis=-1, keepdims=True)
    y = (xf - mean) * jax.lax.rsqrt(var + eps) * weight.astype(jnp.float32)
    return y.astype(x.dtype)


if __name__ == "__main__":
    key = jax.random.PRNGKey(0)
    k1, k2, k3 = jax.random.split(key, 3)

    # Primary shape implied by the module: (batch, seq, hidden), small hidden.
    batch, seq, hidden = 2, 8, 32
    # Non-zero mean exercises the two-pass variance path.
    x = jax.random.normal(k1, (batch, seq, hidden), dtype=jnp.float32) * 2.0 + 3.0
    weight = jnp.ones((hidden,), dtype=jnp.float32)   # module init: ones
    out = jax.block_until_ready(layer_norm(x, weight, eps=1e-6))
    ref = layer_norm_ref(x, weight, eps=1e-6)
    assert out.shape == x.shape
    assert jnp.allclose(out, ref, atol=1e-4, rtol=1e-4), "packed-path mismatch"

    # Standard (hidden >= 128) path, f32, large mean offset.
    x2 = jax.random.normal(k2, (4, 16, 256), dtype=jnp.float32) * 0.5 + 10.0
    w2 = jax.random.normal(k3, (256,), dtype=jnp.float32) * 0.1 + 1.0
    out2 = jax.block_until_ready(layer_norm(x2, w2, eps=1e-6))
    ref2 = layer_norm_ref(x2, w2, eps=1e-6)
    assert jnp.allclose(out2, ref2, atol=1e-4, rtol=1e-4), "standard-path mismatch"

    # bf16 sanity on the standard path (sublane multiple 16).
    xb = x2.astype(jnp.bfloat16)
    wb = w2.astype(jnp.bfloat16)
    outb = jax.block_until_ready(layer_norm(xb, wb, eps=1e-6))
    refb = layer_norm_ref(xb, wb, eps=1e-6)
    assert jnp.allclose(outb.astype(jnp.float32), refb.astype(jnp.float32),
                        atol=3e-2, rtol=3e-2), "bf16 mismatch"

    print("KERNEL_OK")
</pallas_src>

<mosaic_0001>
module attributes {stable_mosaic.version = 11 : i64} {
  func.func @_layernorm_packed_kernel(%arg0: i32, %arg1: memref<4x128xf32, #tpu.memory_space<vmem>>, %arg2: memref<1x128xf32, #tpu.memory_space<vmem>>, %arg3: memref<128x128xf32, #tpu.memory_space<vmem>>, %arg4: memref<4x128xf32, #tpu.memory_space<vmem>>) attributes {dimension_semantics = [#tpu.dimension_semantics<parallel>], iteration_bounds = array<i64: 1>, scalar_prefetch = 0 : i64, scratch_operands = 0 : i64, tpu.core_type = #tpu.core_type<tc>, window_params = [{transform_indices = @transform_0, window_bounds = array<i64: 4, 128>}, {pipeline_mode = #tpu.pipeline_mode<synchronous>, transform_indices = @transform_1, window_bounds = array<i64: 1, 128>}, {pipeline_mode = #tpu.pipeline_mode<synchronous>, transform_indices = @transform_2, window_bounds = array<i64: 128, 128>}, {transform_indices = @transform_3, window_bounds = array<i64: 4, 128>}]} {
    %c0 = arith.constant 0 : index
    %c0_0 = arith.constant 0 : index
    %0 = vector.load %arg1[%c0, %c0_0] : memref<4x128xf32, #tpu.memory_space<vmem>>, vector<4x128xf32>
    %c0_1 = arith.constant 0 : index
    %c0_2 = arith.constant 0 : index
    %1 = vector.load %arg3[%c0_1, %c0_2] : memref<128x128xf32, #tpu.memory_space<vmem>>, vector<128x128xf32>
    %cst = arith.constant dense<0.000000e+00> : vector<4x128xf32>
    %2 = tpu.matmul %0, %1, %cst {dimension_numbers = #tpu.dot_dimension_numbers<[1], [0], [0], [1], [0, 0, 1, 1], [], []>} : vector<4x128xf32>, vector<128x128xf32>, vector<4x128xf32> -> vector<4x128xf32>
    %cst_3 = arith.constant 3.125000e-02 : f32
    %3 = vector.broadcast %cst_3 : f32 to vector<4x128xf32>
    %4 = arith.mulf %2, %3 : vector<4x128xf32>
    %5 = arith.subf %0, %4 : vector<4x128xf32>
    %6 = arith.mulf %5, %5 : vector<4x128xf32>
    %cst_4 = arith.constant dense<0.000000e+00> : vector<4x128xf32>
    %7 = tpu.matmul %6, %1, %cst_4 {dimension_numbers = #tpu.dot_dimension_numbers<[1], [0], [0], [1], [0, 0, 1, 1], [], []>} : vector<4x128xf32>, vector<128x128xf32>, vector<4x128xf32> -> vector<4x128xf32>
    %cst_5 = arith.constant 3.125000e-02 : f32
    %8 = vector.broadcast %cst_5 : f32 to vector<4x128xf32>
    %9 = arith.mulf %7, %8 : vector<4x128xf32>
    %cst_6 = arith.constant 9.99999997E-7 : f32
    %10 = vector.broadcast %cst_6 : f32 to vector<4x128xf32>
    %11 = arith.addf %9, %10 : vector<4x128xf32>
    %12 = math.rsqrt %11 : vector<4x128xf32>
    %c0_7 = arith.constant 0 : index
    %c0_8 = arith.constant 0 : index
    %13 = vector.load %arg2[%c0_7, %c0_8] : memref<1x128xf32, #tpu.memory_space<vmem>>, vector<1x128xf32>
    %14 = arith.mulf %5, %12 : vector<4x128xf32>
    %15 = vector.broadcast %13 : vector<1x128xf32> to vector<4x128xf32>
    %16 = arith.mulf %14, %15 : vector<4x128xf32>
    %c0_9 = arith.constant 0 : index
    %c0_10 = arith.constant 0 : index
    %17 = vector.load %arg4[%c0_9, %c0_10] : memref<4x128xf32, #tpu.memory_space<vmem>>, vector<4x128xf32>
    tpu.vector_store %arg4[%c0_9, %c0_10], %16 {strides = array<i32>} : memref<4x128xf32, #tpu.memory_space<vmem>>, vector<4x128xf32>,
    return
  }
  func.func @transform_0(%arg0: i32) -> (i32, i32) {
    %c0_i32 = arith.constant 0 : i32
    %c0_i32_0 = arith.constant 0 : i32
    return %arg0, %c0_i32 : i32, i32
  }
  func.func @transform_1(%arg0: i32) -> (i32, i32) {
    %c0_i32 = arith.constant 0 : i32
    %c0_i32_0 = arith.constant 0 : i32
    %c0_i32_1 = arith.constant 0 : i32
    return %c0_i32, %c0_i32_0 : i32, i32
  }
  func.func @transform_2(%arg0: i32) -> (i32, i32) {
    %c0_i32 = arith.constant 0 : i32
    %c0_i32_0 = arith.constant 0 : i32
    %c0_i32_1 = arith.constant 0 : i32
    return %c0_i32, %c0_i32_0 : i32, i32
  }
  func.func @transform_3(%arg0: i32) -> (i32, i32) {
    %c0_i32 = arith.constant 0 : i32
    %c0_i32_0 = arith.constant 0 : i32
    return %arg0, %c0_i32 : i32, i32
  }
}

</mosaic_0001>

<llo_original>
// kernel: tpu_custom_call.1
$region0: #{tpu_custom_call.1}
  #allocation0 [shape = 'u32[]', space=smem, size = 0x4, offset = 0x4, fixed_abs, tag = 'smem constant byte address 0x4 - core index']
  #allocation1 [shape = 'u32[144,128]{1,0:T(1,128)}', space=vmem, size = 0x12000, scoped, tag = 'internal scratch']
  %s0 = inlined_call_operand.hbm [shape: f32[4,128], index: 0, kind: input, shape index: {}]
  %s1 = inlined_call_operand.vmem [shape: f32[1,128], index: 1, kind: input, shape index: {}]
  %s2 = inlined_call_operand.hbm [shape: f32[128,128], index: 2, kind: input, shape index: {}]
  %s3 = inlined_call_operand.hbm [shape: f32[4,128], index: 3, kind: output, shape index: {}]
  %s4 = sld [smem:[#allocation0]]
  $region30: #{tpu_custom_call.1} parent=0
    _
  %s6 = ssub.s32 1, %s4
  %s7 = scalar_select 0, %s6, %s4
  $region1: #{tpu_custom_call.1} parent=0
    #allocation2 [shape = 'u8[2048]{0}', space=vmem, size = 0x800, scoped, tag = 'input window, operand 0, single buffered']
    #allocation3 [shape = 's32[1]{0}', space=sflag, size = 0x4, scoped, tag = 'scoped memory for tpu_custom_call.1']
    #allocation4 [shape = 's32[1]{0}', space=sflag, size = 0x4, scoped, tag = 'scoped memory for tpu_custom_call.1']
    #allocation5 [shape = 'u8[65536]{0}', space=vmem, size = 0x10000, scoped, tag = 'input window, operand 2, single buffered']
    #allocation6 [shape = 's32[1]{0}', space=sflag, size = 0x4, scoped, tag = 'scoped memory for tpu_custom_call.1']
    #allocation7 [shape = 'u8[2048]{0}', space=vmem, size = 0x800, scoped, tag = 'output window, operand 0, single buffered']
    %8 = vsyncpa [#allocation3], 0
    %9 = vsyncpa [#allocation6], 0
    %10 = vsyncpa [#allocation4], 0
    // Predicated region
    $region2: #{tpu_custom_call.1} parent=1 // pred_check
      _
    $region3: #{tpu_custom_call.1} parent=1 // pred_check_branch
      %12 = sbr.rel (0) target = $region5
    $region4: #{tpu_custom_call.1} parent=1 // pred_region
      %s14 = ssub.s32 64, 64
      %15 = vsyncadd [#allocation3], %s14
      %s17 = sshll.u32 [#allocation2], 4
      %s18 = int_to_ptr.vmem [resolvable:$true] %s17
      %20 = dma.hbm_to_vmem [thread:$0]  %s0, 64, %s18, [#allocation3]
    $region5: #{tpu_custom_call.1} parent=1 // pred_fallthru
      _
    // Predicated region
    $region6: #{tpu_custom_call.1} parent=1 // pred_check
      _
    $region7: #{tpu_custom_call.1} parent=1 // pred_check_branch
      %22 = sbr.rel (0) target = $region9
    $region8: #{tpu_custom_call.1} parent=1 // pred_region
      _
    $region9: #{tpu_custom_call.1} parent=1 // pred_fallthru
      _
    // Predicated region
    $region10: #{tpu_custom_call.1} parent=1 // pred_check
      _
    $region11: #{tpu_custom_call.1} parent=1 // pred_check_branch
      %24 = sbr.rel (0) target = $region13
    $region12: #{tpu_custom_call.1} parent=1 // pred_region
      %s26 = ssub.s32 2048, 2048
      %27 = vsyncadd [#allocation6], %s26
      %s28 = sshll.u32 [#allocation5], 4
      %s29 = int_to_ptr.vmem [resolvable:$true] %s28
      %34 = dma.hbm_to_vmem [thread:$0]  %s2, 2048, %s29, [#allocation6], 128, 128, 8
    $region13: #{tpu_custom_call.1} parent=1 // pred_fallthru
      _
    // Predicated region
    $region14: #{tpu_custom_call.1} parent=1 // pred_check
      _
    $region15: #{tpu_custom_call.1} parent=1 // pred_check_branch
      %36 = sbr.rel (0) target = $region17
    $region16: #{tpu_custom_call.1} parent=1 // pred_region
      %37 = dma.done [#allocation3], 64
    $region17: #{tpu_custom_call.1} parent=1 // pred_fallthru
      _
    // Predicated region
    $region18: #{tpu_custom_call.1} parent=1 // pred_check
      _
    $region19: #{tpu_custom_call.1} parent=1 // pred_check_branch
      %39 = sbr.rel (0) target = $region21
    $region20: #{tpu_custom_call.1} parent=1 // pred_region
      %40 = dma.done [#allocation6], 2048
    $region21: #{tpu_custom_call.1} parent=1 // pred_fallthru
      _
    %v41 = vld [vmem:[#allocation2] sm:$0xf]
    %v42 = vld [vmem:[#allocation5] sm:$0xff]
    %v43 = vld [vmem:[#allocation5 + $0x8] sm:$0xff]
    %v44 = vld [vmem:[#allocation5 + $0x10] sm:$0xff]
    %v45 = vld [vmem:[#allocation5 + $0x18] sm:$0xff]
    %v46 = vld [vmem:[#allocation5 + $0x20] sm:$0xff]
    %v47 = vld [vmem:[#allocation5 + $0x28] sm:$0xff]
    %v48 = vld [vmem:[#allocation5 + $0x30] sm:$0xff]
    %v49 = vld [vmem:[#allocation5 + $0x38] sm:$0xff]
    %v50 = vld [vmem:[#allocation5 + $0x40] sm:$0xff]
    %v51 = vld [vmem:[#allocation5 + $0x48] sm:$0xff]
    %v52 = vld [vmem:[#allocation5 + $0x50] sm:$0xff]
    %v53 = vld [vmem:[#allocation5 + $0x58] sm:$0xff]
    %v54 = vld [vmem:[#allocation5 + $0x60] sm:$0xff]
    %v55 = vld [vmem:[#allocation5 + $0x68] sm:$0xff]
    %v56 = vld [vmem:[#allocation5 + $0x70] sm:$0xff]
    %v57 = vld [vmem:[#allocation5 + $0x78] sm:$0xff]
    %58 = vmatprep.subr.mxu0 0.0
    %59 = vmatpush1.msra.mxu0 %v42
    %60 = vmatprep.subr.mxu0 0.0
    %61 = vmatpush1.msra.mxu0 %v43
    %62 = vmatprep.subr.mxu0 0.0
    %63 = vmatpush1.msra.mxu0 %v44
    %64 = vmatprep.subr.mxu0 0.0
    %65 = vmatpush1.msra.mxu0 %v45
    %66 = vmatprep.subr.mxu0 0.0
    %67 = vmatpush1.msra.mxu0 %v46
    %68 = vmatprep.subr.mxu0 0.0
    %69 = vmatpush1.msra.mxu0 %v47
    %70 = vmatprep.subr.mxu0 0.0
    %71 = vmatpush1.msra.mxu0 %v48
    %72 = vmatprep.subr.mxu0 0.0
    %73 = vmatpush1.msra.mxu0 %v49
    %74 = vmatprep.subr.mxu0 0.0
    %75 = vmatpush1.msra.mxu0 %v50
    %76 = vmatprep.subr.mxu0 0.0
    %77 = vmatpush1.msra.mxu0 %v51
    %78 = vmatprep.subr.mxu0 0.0
    %79 = vmatpush1.msra.mxu0 %v52
    %80 = vmatprep.subr.mxu0 0.0
    %81 = vmatpush1.msra.mxu0 %v53
    %82 = vmatprep.subr.mxu0 0.0
    %83 = vmatpush1.msra.mxu0 %v54
    %84 = vmatprep.subr.mxu0 0.0
    %85 = vmatpush1.msra.mxu0 %v55
    %86 = vmatprep.subr.mxu0 0.0
    %87 = vmatpush1.msra.mxu0 %v56
    %88 = vmatprep.subr.mxu0 0.0
    %89 = vmatpush1.msra.mxu0 %v57
    %90 = vmatprep.subr.mxu0 0.0
    %91 = vmatpush1.msra.mxu0 0.0
    %92 = vmatprep.subr.mxu0 0.0
    %93 = vmatpush1.msra.mxu0 0.0
    %94 = vmatprep.subr.mxu0 0.0
    %95 = vmatpush1.msra.mxu0 0.0
    %96 = vmatprep.subr.mxu0 0.0
    %97 = vmatpush1.msra.mxu0 0.0
    %98 = vmatprep.subr.mxu0 0.0
    %99 = vmatpush1.msra.mxu0 0.0
    %100 = vmatprep.subr.mxu0 0.0
    %101 = vmatpush1.msra.mxu0 0.0
    %102 = vmatprep.subr.mxu0 0.0
    %103 = vmatpush1.msra.mxu0 0.0
    %104 = vmatprep.subr.mxu0 0.0
    %105 = vmatpush1.msra.mxu0 0.0
    %106 = vmatprep.subr.mxu0 0.0
    %107 = vmatpush1.msra.mxu0 0.0
    %108 = vmatprep.subr.mxu0 0.0
    %109 = vmatpush1.msra.mxu0 0.0
    %110 = vmatprep.subr.mxu0 0.0
    %111 = vmatpush1.msra.mxu0 0.0
    %112 = vmatprep.subr.mxu0 0.0
    %113 = vmatpush1.msra.mxu0 0.0
    %114 = vmatprep.subr.mxu0 0.0
    %115 = vmatpush1.msra.mxu0 0.0
    %116 = vmatprep.subr.mxu0 0.0
    %117 = vmatpush1.msra.mxu0 0.0
    %118 = vmatprep.subr.mxu0 0.0
    %119 = vmatpush1.msra.mxu0 0.0
    %120 = vmatprep.subr.mxu0 0.0
    %121 = vmatpush1.msra.mxu0 0.0
    %122 = vmatprep.mubr.f32.mxu0 0.0
    %123 = vmatmul.mubr.f32.gmra.mrb[0].mxu0 %v41
    %v124 = vpop.f32.mrb[0].mxu0
    %v125 = vadd.f32 0.0, %v124
    %v126 = vpop.f32.mrb[0].mxu0
    %127 = vdwg.mxu0
    %v128 = vmul.f32 %v125, 0.03125
    %v129 = vsub.f32 %v41, %v128
    %v130 = vmul.f32 %v129, %v129
    %131 = vmatprep.subr.mxu0 0.0
    %132 = vmatpush1.msra.mxu0 %v42
    %133 = vmatprep.subr.mxu0 0.0
    %134 = vmatpush1.msra.mxu0 %v43
    %135 = vmatprep.subr.mxu0 0.0
    %136 = vmatpush1.msra.mxu0 %v44
    %137 = vmatprep.subr.mxu0 0.0
    %138 = vmatpush1.msra.mxu0 %v45
    %139 = vmatprep.subr.mxu0 0.0
    %140 = vmatpush1.msra.mxu0 %v46
    %141 = vmatprep.subr.mxu0 0.0
    %142 = vmatpush1.msra.mxu0 %v47
    %143 = vmatprep.subr.mxu0 0.0
    %144 = vmatpush1.msra.mxu0 %v48
    %145 = vmatprep.subr.mxu0 0.0
    %146 = vmatpush1.msra.mxu0 %v49
    %147 = vmatprep.subr.mxu0 0.0
    %148 = vmatpush1.msra.mxu0 %v50
    %149 = vmatprep.subr.mxu0 0.0
    %150 = vmatpush1.msra.mxu0 %v51
    %151 = vmatprep.subr.mxu0 0.0
    %152 = vmatpush1.msra.mxu0 %v52
    %153 = vmatprep.subr.mxu0 0.0
    %154 = vmatpush1.msra.mxu0 %v53
    %155 = vmatprep.subr.mxu0 0.0
    %156 = vmatpush1.msra.mxu0 %v54
    %157 = vmatprep.subr.mxu0 0.0
    %158 = vmatpush1.msra.mxu0 %v55
    %159 = vmatprep.subr.mxu0 0.0
    %160 = vmatpush1.msra.mxu0 %v56
    %161 = vmatprep.subr.mxu0 0.0
    %162 = vmatpush1.msra.mxu0 %v57
    %163 = vmatprep.subr.mxu0 0.0
    %164 = vmatpush1.msra.mxu0 0.0
    %165 = vmatprep.subr.mxu0 0.0
    %166 = vmatpush1.msra.mxu0 0.0
    %167 = vmatprep.subr.mxu0 0.0
    %168 = vmatpush1.msra.mxu0 0.0
    %169 = vmatprep.subr.mxu0 0.0
    %170 = vmatpush1.msra.mxu0 0.0
    %171 = vmatprep.subr.mxu0 0.0
    %172 = vmatpush1.msra.mxu0 0.0
    %173 = vmatprep.subr.mxu0 0.0
    %174 = vmatpush1.msra.mxu0 0.0
    %175 = vmatprep.subr.mxu0 0.0
    %176 = vmatpush1.msra.mxu0 0.0
    %177 = vmatprep.subr.mxu0 0.0
    %178 = vmatpush1.msra.mxu0 0.0
    %179 = vmatprep.subr.mxu0 0.0
    %180 = vmatpush1.msra.mxu0 0.0
    %181 = vmatprep.subr.mxu0 0.0
    %182 = vmatpush1.msra.mxu0 0.0
    %183 = vmatprep.subr.mxu0 0.0
    %184 = vmatpush1.msra.mxu0 0.0
    %185 = vmatprep.subr.mxu0 0.0
    %186 = vmatpush1.msra.mxu0 0.0
    %187 = vmatprep.subr.mxu0 0.0
    %188 = vmatpush1.msra.mxu0 0.0
    %189 = vmatprep.subr.mxu0 0.0
    %190 = vmatpush1.msra.mxu0 0.0
    %191 = vmatprep.subr.mxu0 0.0
    %192 = vmatpush1.msra.mxu0 0.0
    %193 = vmatprep.subr.mxu0 0.0
    %194 = vmatpush1.msra.mxu0 0.0
    %195 = vmatprep.mubr.f32.mxu0 0.0
    %196 = vmatmul.mubr.f32.gmra.mrb[0].mxu0 %v130
    %v197 = vpop.f32.mrb[0].mxu0
    %v198 = vadd.f32 0.0, %v197
    %v199 = vpop.f32.mrb[0].mxu0
    %200 = vdwg.mxu0
    %v201 = vmul.f32 %v198, 0.03125
    %v202 = vadd.f32 %v201, 1e-06
    %v203 = vrsqrt.pop %v202
    %v204 = vld [vmem:[%s1] sm:$0x1]
    %v205 = vmul.f32 %v129, %v203
    %v207 = vlaneseq
    %v208 = vshrl.u32 %v207, 7
    %v209 = vsub.s32 0, %v208
    %v210 = vrot.slane %v204, %v209
    %v212 = vmul.f32 %v205, %v210
    %213 = vst [vmem:[#allocation7] sm:$0xf] %v212
    // Predicated region
    $region22: #{tpu_custom_call.1} parent=1 // pred_check
      _
    $region23: #{tpu_custom_call.1} parent=1 // pred_check_branch
      %215 = sbr.rel (0) target = $region25
    $region24: #{tpu_custom_call.1} parent=1 // pred_region
      %s217 = ssub.s32 64, 64
      %218 = vsyncadd [#allocation4], %s217
      %s220 = sshll.u32 [#allocation7], 4
      %s221 = int_to_ptr.vmem [resolvable:$true] %s220
      %223 = dma.vmem_to_hbm [thread:$0]  %s221, 64, %s3, [#allocation4]
    $region25: #{tpu_custom_call.1} parent=1 // pred_fallthru
      _
    // Predicated region
    $region26: #{tpu_custom_call.1} parent=1 // pred_check
      _
    $region27: #{tpu_custom_call.1} parent=1 // pred_check_branch
      %225 = sbr.rel (0) target = $region29
    $region28: #{tpu_custom_call.1} parent=1 // pred_region
      %226 = dma.done [#allocation4], 64
    $region29: #{tpu_custom_call.1} parent=1 // pred_fallthru
      _
    %227 = vsyncpa [#allocation3], 1
    %228 = vsyncpa [#allocation6], 1
    %229 = vsyncpa [#allocation4], 1

</llo_original>
